<compile_context>
chip_gen: v5e
topology: v5e:2x2
jax: 0.10.0
libtpu: 0.0.40
codegen_flags: <defaults>
</compile_context>

<pallas_src>
import functools

import jax
import jax.numpy as jnp
from jax.experimental import pallas as pl
from jax.experimental.pallas import tpu as pltpu


# ----------------------------- Pallas kernel -----------------------------

def _gcn_kernel(adj_ref, x_ref, w_ref, o_ref):
    """Fused graph convolution for one batch element.

    adj_ref : (N, N)        symmetric-normalized adjacency (VMEM-resident, constant block)
    x_ref   : (1, N, F_in)  this batch element's node features
    w_ref   : (F_in, F_out) Theta weight, pre-transposed (VMEM-resident, constant block)
    o_ref   : (1, N, F_out) relu((adj @ x) @ w)
    """
    ax = jnp.dot(adj_ref[...], x_ref[0], preferred_element_type=jnp.float32)   # (N, F_in)
    h = jnp.dot(ax, w_ref[...], preferred_element_type=jnp.float32)            # (N, F_out)
    o_ref[0] = jnp.maximum(h, 0.0)                                              # fused ReLU


# ----------------------------- wrapper -----------------------------

def gcn_forward(adj, x, w_t):
    """adj: (N, N), x: (B, N, F_in), w_t: (F_in, F_out) -> (B, N, F_out)."""
    B, N, F_in = x.shape
    F_out = w_t.shape[1]
    return pl.pallas_call(
        _gcn_kernel,
        grid=(B,),
        out_shape=jax.ShapeDtypeStruct((B, N, F_out), jnp.float32),
        in_specs=[
            pl.BlockSpec((N, N), lambda b: (0, 0)),          # adjacency: same block every step
            pl.BlockSpec((1, N, F_in), lambda b: (b, 0, 0)),  # per-batch node features
            pl.BlockSpec((F_in, F_out), lambda b: (0, 0)),    # Theta weight: same block every step
        ],
        out_specs=pl.BlockSpec((1, N, F_out), lambda b: (b, 0, 0)),
        compiler_params=pltpu.CompilerParams(
            dimension_semantics=("parallel",),                # shard batch across TCs on v7x
        ),
    )(adj, x, w_t)


# ----------------------------- helpers -----------------------------

def sym_norm_adj(key, n):
    """Deterministic symmetric-normalized adjacency: D^-1/2 (A + I) D^-1/2."""
    a = (jax.random.uniform(key, (n, n)) < 0.3).astype(jnp.float32)
    a = jnp.maximum(a, a.T)                      # symmetrize
    a = a + jnp.eye(n, dtype=jnp.float32)        # self loops
    a = jnp.minimum(a, 1.0)
    d = jnp.sum(a, axis=-1)
    d_inv_sqrt = 1.0 / jnp.sqrt(d)
    return a * d_inv_sqrt[:, None] * d_inv_sqrt[None, :]


def init_theta(key, f_in, f_out, scale=0.1):
    # PyTorch nn.Linear stores weight as (F_out, F_in); pre-transpose ONCE so the
    # kernel consumes (F_in, F_out) directly (no per-forward XLA transpose).
    w_torch_layout = scale * jax.random.normal(key, (f_out, f_in), jnp.float32)
    return jnp.asarray(w_torch_layout.T)


# ----------------------------- main -----------------------------

if __name__ == "__main__":
    B, N, F_IN, F_OUT = 2, 16, 32, 32

    key = jax.random.PRNGKey(0)
    k_adj, k_x, k_w = jax.random.split(key, 3)

    adj = sym_norm_adj(k_adj, N)                               # (N, N)
    x = jax.random.normal(k_x, (B, N, F_IN), jnp.float32)      # (B, N, F_in)
    w_t = init_theta(k_w, F_IN, F_OUT)                         # (F_in, F_out)

    fwd = jax.jit(gcn_forward)
    out = fwd(adj, x, w_t)
    out = jax.block_until_ready(out)

    # reference (pure JAX) check of the fused kernel
    ref = jax.nn.relu(jnp.einsum("nm,bmf,fo->bno", adj, x, w_t))
    assert out.shape == (B, N, F_OUT), out.shape
    assert out.dtype == jnp.float32
    assert bool(jnp.all(jnp.isfinite(out)))
    assert bool(jnp.allclose(out, ref, atol=1e-5, rtol=1e-5))

    print("KERNEL_OK")
</pallas_src>

<mosaic_0001>
module attributes {stable_mosaic.version = 11 : i64} {
  func.func @_gcn_kernel(%arg0: i32, %arg1: memref<16x16xf32, #tpu.memory_space<vmem>>, %arg2: memref<1x16x32xf32, #tpu.memory_space<vmem>>, %arg3: memref<32x32xf32, #tpu.memory_space<vmem>>, %arg4: memref<1x16x32xf32, #tpu.memory_space<vmem>>) attributes {dimension_semantics = [#tpu.dimension_semantics<parallel>], iteration_bounds = array<i64: 2>, scalar_prefetch = 0 : i64, scratch_operands = 0 : i64, tpu.core_type = #tpu.core_type<tc>, window_params = [{pipeline_mode = #tpu.pipeline_mode<synchronous>, transform_indices = @transform_0, window_bounds = array<i64: 16, 16>}, {transform_indices = @transform_1, window_bounds = array<i64: 1, 16, 32>}, {pipeline_mode = #tpu.pipeline_mode<synchronous>, transform_indices = @transform_2, window_bounds = array<i64: 32, 32>}, {transform_indices = @transform_3, window_bounds = array<i64: 1, 16, 32>}]} {
    %c0 = arith.constant 0 : index
    %c0_0 = arith.constant 0 : index
    %0 = vector.load %arg1[%c0, %c0_0] : memref<16x16xf32, #tpu.memory_space<vmem>>, vector<16x16xf32>
    %c0_1 = arith.constant 0 : index
    %c0_2 = arith.constant 0 : index
    %c0_3 = arith.constant 0 : index
    %1 = vector.load %arg2[%c0_1, %c0_2, %c0_3] : memref<1x16x32xf32, #tpu.memory_space<vmem>>, vector<1x16x32xf32>
    %2 = vector.shape_cast %1 : vector<1x16x32xf32> to vector<16x32xf32>
    %cst = arith.constant dense<0.000000e+00> : vector<16x32xf32>
    %3 = tpu.matmul %0, %2, %cst {dimension_numbers = #tpu.dot_dimension_numbers<[1], [0], [0], [1], [0, 0, 1, 1], [], []>} : vector<16x16xf32>, vector<16x32xf32>, vector<16x32xf32> -> vector<16x32xf32>
    %c0_4 = arith.constant 0 : index
    %c0_5 = arith.constant 0 : index
    %4 = vector.load %arg3[%c0_4, %c0_5] : memref<32x32xf32, #tpu.memory_space<vmem>>, vector<32x32xf32>
    %cst_6 = arith.constant dense<0.000000e+00> : vector<16x32xf32>
    %5 = tpu.matmul %3, %4, %cst_6 {dimension_numbers = #tpu.dot_dimension_numbers<[1], [0], [0], [1], [0, 0, 1, 1], [], []>} : vector<16x32xf32>, vector<32x32xf32>, vector<16x32xf32> -> vector<16x32xf32>
    %cst_7 = arith.constant 0.000000e+00 : f32
    %6 = vector.broadcast %cst_7 : f32 to vector<16x32xf32>
    %7 = arith.maximumf %5, %6 : vector<16x32xf32>
    %c0_8 = arith.constant 0 : index
    %c0_9 = arith.constant 0 : index
    %c0_10 = arith.constant 0 : index
    %8 = vector.load %arg4[%c0_8, %c0_9, %c0_10] : memref<1x16x32xf32, #tpu.memory_space<vmem>>, vector<1x16x32xf32>
    %9 = vector.shape_cast %8 : vector<1x16x32xf32> to vector<16x32xf32>
    %10 = vector.shape_cast %7 : vector<16x32xf32> to vector<1x16x32xf32>
    tpu.vector_store %arg4[%c0_8, %c0_9, %c0_10], %10 {strides = array<i32>} : memref<1x16x32xf32, #tpu.memory_space<vmem>>, vector<1x16x32xf32>,
    return
  }
  func.func @transform_0(%arg0: i32) -> (i32, i32) {
    %c0_i32 = arith.constant 0 : i32
    %c0_i32_0 = arith.constant 0 : i32
    %c0_i32_1 = arith.constant 0 : i32
    return %c0_i32, %c0_i32_0 : i32, i32
  }
  func.func @transform_1(%arg0: i32) -> (i32, i32, i32) {
    %c0_i32 = arith.constant 0 : i32
    %c0_i32_0 = arith.constant 0 : i32
    %c0_i32_1 = arith.constant 0 : i32
    return %arg0, %c0_i32, %c0_i32_0 : i32, i32, i32
  }
  func.func @transform_2(%arg0: i32) -> (i32, i32) {
    %c0_i32 = arith.constant 0 : i32
    %c0_i32_0 = arith.constant 0 : i32
    %c0_i32_1 = arith.constant 0 : i32
    return %c0_i32, %c0_i32_0 : i32, i32
  }
  func.func @transform_3(%arg0: i32) -> (i32, i32, i32) {
    %c0_i32 = arith.constant 0 : i32
    %c0_i32_0 = arith.constant 0 : i32
    %c0_i32_1 = arith.constant 0 : i32
    return %arg0, %c0_i32, %c0_i32_0 : i32, i32, i32
  }
}

</mosaic_0001>

<llo_original>
// kernel: gcn_forward.1
$region0: #{gcn_forward.1}
  #allocation0 [shape = 'u32[]', space=smem, size = 0x4, offset = 0x4, fixed_abs, tag = 'smem constant byte address 0x4 - core index']
  #allocation1 [shape = 'u32[72,128]{1,0:T(1,128)}', space=vmem, size = 0x9000, scoped, tag = 'internal scratch']
  %s0 = inlined_call_operand.hbm [shape: f32[16,16], index: 0, kind: input, shape index: {}]
  %s1 = inlined_call_operand.hbm [shape: f32[2,16,32], index: 1, kind: input, shape index: {}]
  %s2 = inlined_call_operand.hbm [shape: f32[32,32], index: 2, kind: input, shape index: {}]
  %s3 = inlined_call_operand.hbm [shape: f32[2,16,32], index: 3, kind: output, shape index: {}]
  %s4 = sld [smem:[#allocation0]]
  $region57: #{gcn_forward.1} parent=0
    _
  %s6 = ssub.s32 1, %s4
  %s7 = scalar_select 0, %s6, %s4
  $region1: #{gcn_forward.1} parent=0
    #allocation2 [shape = 'u8[8192]{0}', space=vmem, size = 0x2000, scoped, tag = 'input window, operand 0, single buffered']
    #allocation3 [shape = 's32[2]{0}', space=sflag, size = 0x8, scoped, tag = 'scoped memory for gcn_forward.1']
    #allocation4 [shape = 's32[2]{0}', space=sflag, size = 0x8, scoped, tag = 'scoped memory for gcn_forward.1']
    #allocation5 [shape = 'u8[16384]{0}', space=vmem, size = 0x4000, scoped, tag = 'input window, operand 1']
    #allocation6 [shape = 's32[2]{0}', space=sflag, size = 0x8, scoped, tag = 'scoped memory for gcn_forward.1']
    #allocation7 [shape = 'u8[16384]{0}', space=vmem, size = 0x4000, scoped, tag = 'input window, operand 2, single buffered']
    #allocation8 [shape = 'u8[16384]{0}', space=vmem, size = 0x4000, scoped, tag = 'output window, operand 0']
    %8 = vsyncpa [#allocation3], 0
    %9 = vsyncpa [#allocation6], 0
    %s10 = scalar_lea.sflag [#allocation6], 1
    %11 = vsyncpa %s10, 0
    %12 = vsyncpa [#allocation4], 0
    %s13 = scalar_lea.sflag [#allocation4], 1
    %14 = vsyncpa %s13, 0
    loop: start=0, step=1, limit=4
    $region2: #{gcn_forward.1} parent=1 // loop_pre_header
      _
    $region3: #{gcn_forward.1} parent=1 // loop_header
      %s16 = sphi 0, %s20
      %p17 = scmp.ge.s32.totalorder %s16, 4
      %s24 = sphi 0, %s24
      %s26 = sphi 0, %s24
      %s27 = sphi 0, %s26
      %s41 = sphi 0, %s27
      %s47 = sphi 0, %s49
      %s50 = sphi 0, %s47
      %s51 = sphi 0, %s50
      %s67 = sphi 0, %s51
      %s71 = sphi 0, %s71
      %s73 = sphi 0, %s71
      %s74 = sphi 0, %s73
      %s88 = sphi 0, %s74
      %s94 = sphi 0, %s96
      %s97 = sphi 0, %s94
      %s98 = sphi 0, %s97
      %s114 = sphi 0, %s98
    $region4: #{gcn_forward.1} parent=1 // loop_header_branch
      %19 = sbr.rel (%p17) target = $region8
    $region5: #{gcn_forward.1} parent=1 // loop_body
      %s21 = ssub.s32 %s16, 1
      %s22 = ssub.s32 %s16, 2
      %s23 = sadd.s32 %s16, 1
      %s25 = sadd.s32 %s24, 1
      %p28 = scmp.eq.s32.totalorder %s16, 1
      %p29 = scmp.ne.s32.totalorder %s24, %s26
      %p30 = scmp.eq.s32.totalorder %s16, 0
      %p31 = por %p29, %p30
      %p32 = scmp.ne.s32.totalorder %s24, %s26
      %p33 = scmp.eq.s32.totalorder %s21, 1
      %p34 = por %p32, %p33
      %p35 = scmp.ne.s32.totalorder %s26, %s27
      %p36 = scmp.eq.s32.totalorder %s21, 0
      %p37 = por %p35, %p36
      %p38 = scmp.ne.s32.totalorder %s26, %s27
      %p39 = scmp.eq.s32.totalorder %s22, 1
      %p40 = por %p38, %p39
      %p42 = scmp.ne.s32.totalorder %s27, %s41
      %p43 = scmp.eq.s32.totalorder %s22, 0
      %p44 = por %p42, %p43
      %s45 = ssub.s32 %s16, %s23
      %p46 = scmp.eq.s32.totalorder %s45, 0
      %s48 = sadd.s32 %s47, 1
      %s49 = scalar_select %p46, %s47, %s48
      %p52 = pneg %p46
      %p53 = scmp.eq.s32.totalorder %s16, 1
      %p54 = por %p52, %p53
      %p55 = scmp.ne.s32.totalorder %s47, %s50
      %p56 = scmp.eq.s32.totalorder %s16, 0
      %p57 = por %p55, %p56
      %p58 = scmp.ne.s32.totalorder %s47, %s50
      %p59 = scmp.eq.s32.totalorder %s21, 1
      %p60 = por %p58, %p59
      %p61 = scmp.ne.s32.totalorder %s50, %s51
      %p62 = scmp.eq.s32.totalorder %s21, 0
      %p63 = por %p61, %p62
      %p64 = scmp.ne.s32.totalorder %s50, %s51
      %p65 = scmp.eq.s32.totalorder %s22, 1
      %p66 = por %p64, %p65
      %p68 = scmp.ne.s32.totalorder %s51, %s67
      %p69 = scmp.eq.s32.totalorder %s22, 0
      %p70 = por %p68, %p69
      %s72 = sadd.s32 %s71, 1
      %p75 = scmp.eq.s32.totalorder %s16, 1
      %p76 = scmp.ne.s32.totalorder %s71, %s73
      %p77 = scmp.eq.s32.totalorder %s16, 0
      %p78 = por %p76, %p77
      %p79 = scmp.ne.s32.totalorder %s71, %s73
      %p80 = scmp.eq.s32.totalorder %s21, 1
      %p81 = por %p79, %p80
      %p82 = scmp.ne.s32.totalorder %s73, %s74
      %p83 = scmp.eq.s32.totalorder %s21, 0
      %p84 = por %p82, %p83
      %p85 = scmp.ne.s32.totalorder %s73, %s74
      %p86 = scmp.eq.s32.totalorder %s22, 1
      %p87 = por %p85, %p86
      %p89 = scmp.ne.s32.totalorder %s74, %s88
      %p90 = scmp.eq.s32.totalorder %s22, 0
      %p91 = por %p89, %p90
      %s92 = ssub.s32 %s16, %s23
      %p93 = scmp.eq.s32.totalorder %s92, 0
      %s95 = sadd.s32 %s94, 1
      %s96 = scalar_select %p93, %s94, %s95
      %p99 = pneg %p93
      %p100 = scmp.eq.s32.totalorder %s16, 1
      %p101 = por %p99, %p100
      %p102 = scmp.ne.s32.totalorder %s94, %s97
      %p103 = scmp.eq.s32.totalorder %s16, 0
      %p104 = por %p102, %p103
      %p105 = scmp.ne.s32.totalorder %s94, %s97
      %p106 = scmp.eq.s32.totalorder %s21, 1
      %p107 = por %p105, %p106
      %p108 = scmp.ne.s32.totalorder %s97, %s98
      %p109 = scmp.eq.s32.totalorder %s21, 0
      %p110 = por %p108, %p109
      %p111 = scmp.ne.s32.totalorder %s97, %s98
      %p112 = scmp.eq.s32.totalorder %s22, 1
      %p113 = por %p111, %p112
      %p115 = scmp.ne.s32.totalorder %s98, %s114
      %p116 = scmp.eq.s32.totalorder %s22, 0
      %p117 = por %p115, %p116
      %p118 = scmp.le.s32.totalorder 1, %s16
      %p119 = scmp.lt.s32.totalorder %s16, 3
      %p120 = pnand %p118, %p119
      %p121 = pneg %p120
      // Predicated region
      $region9: #{gcn_forward.1} parent=5 // pred_check
        _
      $region10: #{gcn_forward.1} parent=5 // pred_check_branch
        %123 = sbr.rel (%p120) target = $region12
      $region11: #{gcn_forward.1} parent=5 // pred_region
        %s124 = ssub.s32 %s16, 1
        // Predicated region
        $region13: #{gcn_forward.1} parent=11 // pred_check
          %p125 = pneg %p37
        $region14: #{gcn_forward.1} parent=11 // pred_check_branch
          %127 = sbr.rel (%p125) target = $region16
        $region15: #{gcn_forward.1} parent=11 // pred_region
          %129 = vsyncadd [#allocation3], 0
          %s130 = sshll.u32 %s0, 4
          %s131 = int_to_ptr.hbm [resolvable:$true] %s130
          %s132 = sshll.u32 [#allocation2], 4
          %s133 = int_to_ptr.vmem [resolvable:$true] %s132
          %138 = dma.hbm_to_vmem [thread:$0]  %s131, 256, %s133, [#allocation3], 128, 128, 8
        $region16: #{gcn_forward.1} parent=11 // pred_fallthru
          _
        // Predicated region
        $region17: #{gcn_forward.1} parent=11 // pred_check
          %p139 = pneg %p84
        $region18: #{gcn_forward.1} parent=11 // pred_check_branch
          %141 = sbr.rel (%p139) target = $region20
        $region19: #{gcn_forward.1} parent=11 // pred_region
          %143 = vsyncadd [#allocation6], 0
          %s144 = sshll.u32 %s2, 4
          %s145 = int_to_ptr.hbm [resolvable:$true] %s144
          %s146 = sshll.u32 [#allocation7], 4
          %s147 = int_to_ptr.vmem [resolvable:$true] %s146
          %152 = dma.hbm_to_vmem [thread:$0]  %s145, 512, %s147, [#allocation6], 128, 128, 8
        $region20: #{gcn_forward.1} parent=11 // pred_fallthru
          _
      $region12: #{gcn_forward.1} parent=5 // pred_fallthru
        _
      %p153 = scmp.lt.s32.totalorder %s16, 2
      // Predicated region
      $region21: #{gcn_forward.1} parent=5 // pred_check
        %p154 = pneg %p153
      $region22: #{gcn_forward.1} parent=5 // pred_check_branch
        %156 = sbr.rel (%p154) target = $region24
      $region23: #{gcn_forward.1} parent=5 // pred_region
        // Predicated region
        $region25: #{gcn_forward.1} parent=23 // pred_check
          %p157 = pneg %p57
        $region26: #{gcn_forward.1} parent=23 // pred_check_branch
          %159 = sbr.rel (%p157) target = $region28
        $region27: #{gcn_forward.1} parent=23 // pred_region
          %s160 = sand.u32 %s16, 1
          %s161 = scalar_lea.sflag [#allocation6], %s160
          %s162 = sand.u32 %s47, 1
          %s163 = smul.addr %s162, 16
          %s164 = scalar_lea.vmem [#allocation5], %s163
          %166 = vsyncadd %s161, 0
          %s167 = smul.addr %s16, 2
          %s168 = smul.addr %s167, 8
          %s169 = scalar_lea.hbm %s1, %s168
          %s170 = sshll.u32 %s169, 4
          %s171 = int_to_ptr.hbm [resolvable:$true] %s170
          %s172 = sshll.u32 %s164, 4
          %s173 = int_to_ptr.vmem [resolvable:$true] %s172
          %178 = dma.hbm_to_vmem [thread:$0]  %s171, 256, %s173, %s161, 128, 128, 8
        $region28: #{gcn_forward.1} parent=23 // pred_fallthru
          _
      $region24: #{gcn_forward.1} parent=5 // pred_fallthru
        _
      %p179 = scmp.le.s32.totalorder 1, %s16
      %p180 = scmp.lt.s32.totalorder %s16, 3
      %p181 = pnand %p179, %p180
      %p182 = pneg %p181
      // Predicated region
      $region29: #{gcn_forward.1} parent=5 // pred_check
        _
      $region30: #{gcn_forward.1} parent=5 // pred_check_branch
        %184 = sbr.rel (%p181) target = $region32
      $region31: #{gcn_forward.1} parent=5 // pred_region
        %s185 = ssub.s32 %s16, 1
        // Predicated region
        $region33: #{gcn_forward.1} parent=31 // pred_check
          %p186 = pneg %p37
        $region34: #{gcn_forward.1} parent=31 // pred_check_branch
          %188 = sbr.rel (%p186) target = $region36
        $region35: #{gcn_forward.1} parent=31 // pred_region
          %190 = dma.done [#allocation3], 256
        $region36: #{gcn_forward.1} parent=31 // pred_fallthru
          _
        %s191 = sand.u32 %s21, 1
        %s192 = scalar_lea.sflag [#allocation6], %s191
        %s193 = sand.u32 %s50, 1
        %s194 = smul.addr %s193, 16
        %s195 = scalar_lea.vmem [#allocation5], %s194
        // Predicated region
        $region37: #{gcn_forward.1} parent=31 // pred_check
          %p196 = pneg %p63
        $region38: #{gcn_forward.1} parent=31 // pred_check_branch
          %198 = sbr.rel (%p196) target = $region40
        $region39: #{gcn_forward.1} parent=31 // pred_region
          %200 = dma.done %s192, 256
        $region40: #{gcn_forward.1} parent=31 // pred_fallthru
          _
        // Predicated region
        $region41: #{gcn_forward.1} parent=31 // pred_check
          %p201 = pneg %p84
        $region42: #{gcn_forward.1} parent=31 // pred_check_branch
          %203 = sbr.rel (%p201) target = $region44
        $region43: #{gcn_forward.1} parent=31 // pred_region
          %205 = dma.done [#allocation6], 512
        $region44: #{gcn_forward.1} parent=31 // pred_fallthru
          _
        %p206 = pneg %p37
        %p207 = pneg %p34
        %s208 = sand.u32 %s21, 1
        %s209 = scalar_lea.sflag [#allocation6], %s208
        %s210 = sand.u32 %s50, 1
        %s211 = smul.addr %s210, 16
        %s212 = scalar_lea.vmem [#allocation5], %s211
        %p213 = pneg %p63
        %p214 = pneg %p60
        %p215 = pneg %p84
        %p216 = pneg %p81
        %p217 = pneg %p110
        %p218 = pneg %p107
        %s219 = sand.u32 %s97, 1
        %s220 = scalar_lea.sflag [#allocation4], %s219
        %s221 = sand.u32 %s97, 1
        %s222 = smul.addr %s221, 16
        %s223 = scalar_lea.vmem [#allocation8], %s222
        %v224 = vld [vmem:[#allocation2] sm:$0xff]
        %v225 = vld [vmem:[#allocation2 + $0x8] sm:$0xff]
        %v226 = vld [vmem:[%s195] sm:$0xff]
        %v227 = vld [vmem:[%s195 + $0x8] sm:$0xff]
        %vm228 = vcmask 130048
        %v230 = vsel %vm228, %v224, 0
        %v233 = vsel %vm228, %v225, 0
        %235 = vmatpush.msra.mxu0 0.0
        %236 = vmatpush.msra.mxu0 0.0
        %237 = vmatpush.msra.mxu0 0.0
        %238 = vmatpush.msra.mxu0 0.0
        %239 = vmatpush.msra.mxu0 0.0
        %240 = vmatpush.msra.mxu0 0.0
        %241 = vmatpush.msra.mxu0 0.0
        %242 = vmatpush.msra.mxu0 0.0
        %243 = vmatpush.msra.mxu0 0.0
        %244 = vmatpush.msra.mxu0 0.0
        %245 = vmatpush.msra.mxu0 0.0
        %246 = vmatpush.msra.mxu0 0.0
        %247 = vmatpush.msra.mxu0 0.0
        %248 = vmatpush.msra.mxu0 0.0
        %249 = vmatpush.msra.mxu0 %v227
        %250 = vmatpush.msra.mxu0 %v226
        %251 = vmatmul.f32.gmra.mxu0 %v230
        %v252 = vpop.f32.mrf.mxu0
        %v253 = vadd.f32 0.0, %v252
        %254 = vmatmul.f32.gmra.mxu0 %v233
        %v255 = vpop.f32.mrf.mxu0
        %v256 = vadd.f32 0.0, %v255
        %257 = vdwg.mxu0
        %v258 = vld [vmem:[#allocation7] sm:$0xff]
        %v259 = vld [vmem:[#allocation7 + $0x8] sm:$0xff]
        %v260 = vld [vmem:[#allocation7 + $0x10] sm:$0xff]
        %v261 = vld [vmem:[#allocation7 + $0x18] sm:$0xff]
        %vm262 = vcmask 261120
        %v264 = vsel %vm262, %v253, 0
        %v267 = vsel %vm262, %v256, 0
        %269 = vmatpush.msra.mxu0 0.0
        %270 = vmatpush.msra.mxu0 0.0
        %271 = vmatpush.msra.mxu0 0.0
        %272 = vmatpush.msra.mxu0 0.0
        %273 = vmatpush.msra.mxu0 0.0
        %274 = vmatpush.msra.mxu0 0.0
        %275 = vmatpush.msra.mxu0 0.0
        %276 = vmatpush.msra.mxu0 0.0
        %277 = vmatpush.msra.mxu0 0.0
        %278 = vmatpush.msra.mxu0 0.0
        %279 = vmatpush.msra.mxu0 0.0
        %280 = vmatpush.msra.mxu0 0.0
        %281 = vmatpush.msra.mxu0 %v261
        %282 = vmatpush.msra.mxu0 %v260
        %283 = vmatpush.msra.mxu0 %v259
        %284 = vmatpush.msra.mxu0 %v258
        %285 = vmatmul.f32.gmra.mxu0 %v264
        %v286 = vpop.f32.mrf.mxu0
        %v287 = vadd.f32 0.0, %v286
        %288 = vmatmul.f32.gmra.mxu0 %v267
        %v289 = vpop.f32.mrf.mxu0
        %v290 = vadd.f32 0.0, %v289
        %291 = vdwg.mxu0
        %v292 = vmax.f32 %v287, 0.0
        %v293 = vmax.f32 %v290, 0.0
        %294 = vst.msk [vmem:[%s223] sm:$0xff] %vm262, %v292
        %295 = vst.msk [vmem:[%s223 + $0x8] sm:$0xff] %vm262, %v293
        %s296 = sand.u32 %s97, 1
        %s297 = scalar_lea.sflag [#allocation4], %s296
        %s298 = sand.u32 %s97, 1
        %s299 = smul.addr %s298, 16
        %s300 = scalar_lea.vmem [#allocation8], %s299
        // Predicated region
        $region45: #{gcn_forward.1} parent=31 // pred_check
          %p301 = pneg %p107
        $region46: #{gcn_forward.1} parent=31 // pred_check_branch
          %303 = sbr.rel (%p301) target = $region48
        $region47: #{gcn_forward.1} parent=31 // pred_region
          %305 = vsyncadd %s297, 0
          %s306 = smul.addr %s21, 2
          %s307 = smul.addr %s306, 8
          %s308 = scalar_lea.hbm %s3, %s307
          %s309 = sshll.u32 %s300, 4
          %s310 = int_to_ptr.vmem [resolvable:$true] %s309
          %s311 = sshll.u32 %s308, 4
          %s312 = int_to_ptr.hbm [resolvable:$true] %s311
          %317 = dma.vmem_to_hbm [thread:$0]  %s310, 256, %s312, %s297, 128, 128, 8
        $region48: #{gcn_forward.1} parent=31 // pred_fallthru
          _
      $region32: #{gcn_forward.1} parent=5 // pred_fallthru
        _
      %p318 = scmp.le.s32.totalorder 2, %s16
      // Predicated region
      $region49: #{gcn_forward.1} parent=5 // pred_check
        %p319 = pneg %p318
      $region50: #{gcn_forward.1} parent=5 // pred_check_branch
        %321 = sbr.rel (%p319) target = $region52
      $region51: #{gcn_forward.1} parent=5 // pred_region
        %s322 = ssub.s32 %s16, 2
        // Predicated region
        $region53: #{gcn_forward.1} parent=51 // pred_check
          %p323 = pneg %p113
        $region54: #{gcn_forward.1} parent=51 // pred_check_branch
          %325 = sbr.rel (%p323) target = $region56
        $region55: #{gcn_forward.1} parent=51 // pred_region
          %s326 = sand.u32 %s98, 1
          %s327 = scalar_lea.sflag [#allocation4], %s326
          %s328 = sand.u32 %s98, 1
          %s329 = smul.addr %s328, 16
          %s330 = scalar_lea.vmem [#allocation8], %s329
          %332 = dma.done %s327, 256
        $region56: #{gcn_forward.1} parent=51 // pred_fallthru
          _
      $region52: #{gcn_forward.1} parent=5 // pred_fallthru
        _
    $region6: #{gcn_forward.1} parent=1 // loop_footer
      %s20 = sadd.s32 1, %s16
    $region7: #{gcn_forward.1} parent=1 // loop_footer_branch
      %15 = sbr.rel target = $region3
    $region8: #{gcn_forward.1} parent=1 // loop_exit
      _
    %333 = vsyncpa [#allocation3], 1
    %s334 = scalar_lea.sflag [#allocation3], 1
    %335 = vsyncpa %s334, 1
    %336 = vsyncpa [#allocation6], 1
    %s337 = scalar_lea.sflag [#allocation6], 1
    %338 = vsyncpa %s337, 1
    %339 = vsyncpa [#allocation4], 1
    %s340 = scalar_lea.sflag [#allocation4], 1
    %341 = vsyncpa %s340, 1

</llo_original>
